<compile_context>
chip_gen: v5e
topology: v5e:2x2
jax: 0.10.0
libtpu: 0.0.40
codegen_flags: <defaults>
</compile_context>

<pallas_src>
import jax
import jax.numpy as jnp
from jax.experimental import pallas as pl
from jax.experimental.pallas import tpu as pltpu


def _round_up(x, m):
    return (x + m - 1) // m * m


def _linear_kernel(x_ref, wt_ref, b_ref, o_ref, acc_ref):
    # x_ref : (tb, tk) bf16   activations tile
    # wt_ref: (tk, tn) bf16   pre-transposed weight tile
    # b_ref : (1,  tn) f32    bias slice (resident across k)
    # o_ref : (tb, tn) f32    output tile
    # acc_ref:(tb, tn) f32    accumulator scratch (lives across k steps)
    @pl.when(pl.program_id(2) == 0)
    def _init():
        # Seed the accumulator with the bias so finalize is a plain store.
        acc_ref[...] = jnp.broadcast_to(b_ref[...], acc_ref.shape).astype(jnp.float32)

    acc_ref[...] += jnp.dot(x_ref[...], wt_ref[...],
                            preferred_element_type=jnp.float32)

    @pl.when(pl.program_id(2) == pl.num_programs(2) - 1)
    def _finalize():
        o_ref[...] = acc_ref[...].astype(o_ref.dtype)


def prepare_linear_classifier_params(weight, bias):
    """Hoisted one-time prep: pre-transpose W to (D, N) and cast to bf16."""
    wt = jnp.asarray(weight).T.astype(jnp.bfloat16)        # (D, N)
    b = jnp.asarray(bias).astype(jnp.float32)               # (N,)
    return wt, b


def linear_classifier_forward(x, wt, bias, *, tb=None, tn=None, tk=None):
    """Pallas equivalent of LinearClassifier.forward.

    x    : (B, ...)  any trailing shape; flattened to (B, D)
    wt   : (D, N)    pre-transposed weight (see prepare_linear_classifier_params)
    bias : (N,)
    returns: (B, N) float32
    """
    B = x.shape[0]
    x2d = x.reshape(B, -1).astype(jnp.bfloat16)
    D = x2d.shape[1]
    D_w, N = wt.shape
    assert D_w == D, f"weight dim {D_w} != flattened feature dim {D}"

    wt = wt.astype(jnp.bfloat16)
    b2d = bias.astype(jnp.float32).reshape(1, N)

    # MXU-aligned default tiles (valid on v5e 128x and v6e/v7x 256x MXUs),
    # clamped to the padded problem size so tiny demos stay a single tile.
    tb = min(256, _round_up(B, 8)) if tb is None else tb
    tn = min(256, _round_up(N, 128)) if tn is None else tn
    tk = min(512, _round_up(D, 128)) if tk is None else tk

    Bp, Np, Dp = _round_up(B, tb), _round_up(N, tn), _round_up(D, tk)

    # Zero-pad so tiles divide evenly; zero K-padding contributes nothing.
    if (Bp, Dp) != (B, D):
        x2d = jnp.pad(x2d, ((0, Bp - B), (0, Dp - D)))
    if (Dp, Np) != (D, N):
        wt = jnp.pad(wt, ((0, Dp - D), (0, Np - N)))
    if Np != N:
        b2d = jnp.pad(b2d, ((0, 0), (0, Np - N)))

    grid = (Bp // tb, Np // tn, Dp // tk)

    # VMEM budget: double-buffered bf16 input tiles + f32 out tile + f32 acc.
    tile_bytes = 2 * (tb * tk * 2 + tk * tn * 2 + tn * 4 + tb * tn * 4) + tb * tn * 4
    vmem_limit = int(min(96 * 1024 * 1024, max(32 * 1024 * 1024, 2 * tile_bytes)))

    cost = pl.CostEstimate(
        flops=2 * Bp * Dp * Np,
        transcendentals=0,
        bytes_accessed=(Bp * Dp * 2) + (Dp * Np * 2) + (Np * 4) + (Bp * Np * 4),
    )

    out = pl.pallas_call(
        _linear_kernel,
        out_shape=jax.ShapeDtypeStruct((Bp, Np), jnp.float32),
        grid_spec=pltpu.PrefetchScalarGridSpec(
            num_scalar_prefetch=0,
            grid=grid,
            in_specs=[
                pl.BlockSpec((tb, tk), lambda i, j, k: (i, k)),   # x rows
                pl.BlockSpec((tk, tn), lambda i, j, k: (k, j)),   # W^T tile
                pl.BlockSpec((1, tn), lambda i, j, k: (0, j)),    # bias slice
            ],
            out_specs=pl.BlockSpec((tb, tn), lambda i, j, k: (i, j)),
            scratch_shapes=[pltpu.VMEM((tb, tn), jnp.float32)],
        ),
        compiler_params=pltpu.CompilerParams(
            dimension_semantics=("parallel", "parallel", "arbitrary"),
            vmem_limit_bytes=vmem_limit,
        ),
        cost_estimate=cost,
    )(x2d, wt, b2d)

    if (Bp, Np) != (B, N):
        out = out[:B, :N]
    return out


if __name__ == "__main__":
    # Small shapes consistent with the module: frozen features (B, C, H, W)
    # get flattened to dim = C*H*W by x.view(B, -1).
    B, C, H, W = 2, 4, 16, 16
    dim = C * H * W            # 1024  -> exercises 2 K-tiles with tk=512
    num_labels = 128

    key = jax.random.PRNGKey(0)
    kx, kw = jax.random.split(key)

    x = jax.random.normal(kx, (B, C, H, W), dtype=jnp.float32)
    # Deterministic init matching the module: weight ~ N(0, 0.01), bias = 0.
    weight = 0.01 * jax.random.normal(kw, (num_labels, dim), dtype=jnp.float32)
    bias = jnp.zeros((num_labels,), dtype=jnp.float32)

    # One-time param prep (transpose + bf16 cast hoisted out of forward).
    wt, b = prepare_linear_classifier_params(weight, bias)

    fwd = jax.jit(linear_classifier_forward)
    out = jax.block_until_ready(fwd(x, wt, b))
    assert out.shape == (B, num_labels)

    # Reference checks.
    x2d = x.reshape(B, -1).astype(jnp.float32)
    # (a) exact-path reference with bf16-cast operands (what the kernel computes)
    ref_bf16 = (x2d.astype(jnp.bfloat16).astype(jnp.float32)
                @ weight.T.astype(jnp.bfloat16).astype(jnp.float32) + bias)
    # (b) full-f32 reference (module math); loose tolerance due to bf16 operands
    ref_f32 = x2d @ weight.T + bias

    assert jnp.allclose(out, ref_bf16, atol=2e-3, rtol=2e-3)
    assert jnp.allclose(out, ref_f32, atol=2e-2, rtol=2e-2)

    print("KERNEL_OK")
</pallas_src>

<mosaic_0001>
module attributes {stable_mosaic.version = 11 : i64} {
  func.func @_linear_kernel(%arg0: i32, %arg1: i32, %arg2: i32, %arg3: memref<8x512xbf16, #tpu.memory_space<vmem>>, %arg4: memref<512x128xbf16, #tpu.memory_space<vmem>>, %arg5: memref<1x128xf32, #tpu.memory_space<vmem>>, %arg6: memref<8x128xf32, #tpu.memory_space<vmem>>, %arg7: memref<8x128xf32, #tpu.memory_space<vmem>>) attributes {dimension_semantics = [#tpu.dimension_semantics<parallel>, #tpu.dimension_semantics<parallel>, #tpu.dimension_semantics<arbitrary>], iteration_bounds = array<i64: 1, 1, 2>, scalar_prefetch = 0 : i64, scratch_operands = 1 : i64, tpu.core_type = #tpu.core_type<tc>, window_params = [{transform_indices = @transform_0, window_bounds = array<i64: 8, 512>}, {transform_indices = @transform_1, window_bounds = array<i64: 512, 128>}, {transform_indices = @transform_2, window_bounds = array<i64: 1, 128>}, {transform_indices = @transform_3, window_bounds = array<i64: 8, 128>}]} {
    %c0_i32 = arith.constant 0 : i32
    %0 = arith.cmpi eq, %arg2, %c0_i32 : i32
    %1 = arith.extui %0 : i1 to i32
    %c0_i32_0 = arith.constant 0 : i32
    %2 = arith.cmpi ne, %1, %c0_i32_0 : i32
    scf.if %2 {
      %c0_9 = arith.constant 0 : index
      %c0_10 = arith.constant 0 : index
      %12 = vector.load %arg5[%c0_9, %c0_10] : memref<1x128xf32, #tpu.memory_space<vmem>>, vector<1x128xf32>
      %13 = vector.shape_cast %12 : vector<1x128xf32> to vector<1x128xf32>
      %14 = vector.broadcast %13 : vector<1x128xf32> to vector<8x128xf32>
      %c0_11 = arith.constant 0 : index
      %c0_12 = arith.constant 0 : index
      %15 = vector.load %arg7[%c0_11, %c0_12] : memref<8x128xf32, #tpu.memory_space<vmem>>, vector<8x128xf32>
      tpu.vector_store %arg7[%c0_11, %c0_12], %14 {strides = array<i32>} : memref<8x128xf32, #tpu.memory_space<vmem>>, vector<8x128xf32>,
    } else {
    }
    %c0 = arith.constant 0 : index
    %c0_1 = arith.constant 0 : index
    %3 = vector.load %arg7[%c0, %c0_1] : memref<8x128xf32, #tpu.memory_space<vmem>>, vector<8x128xf32>
    %c0_2 = arith.constant 0 : index
    %c0_3 = arith.constant 0 : index
    %4 = vector.load %arg3[%c0_2, %c0_3] : memref<8x512xbf16, #tpu.memory_space<vmem>>, vector<8x512xbf16>
    %c0_4 = arith.constant 0 : index
    %c0_5 = arith.constant 0 : index
    %5 = vector.load %arg4[%c0_4, %c0_5] : memref<512x128xbf16, #tpu.memory_space<vmem>>, vector<512x128xbf16>
    %cst = arith.constant dense<0.000000e+00> : vector<8x128xf32>
    %6 = tpu.matmul %4, %5, %cst {dimension_numbers = #tpu.dot_dimension_numbers<[1], [0], [0], [1], [0, 0, 1, 1], [], []>} : vector<8x512xbf16>, vector<512x128xbf16>, vector<8x128xf32> -> vector<8x128xf32>
    %7 = arith.addf %3, %6 : vector<8x128xf32>
    %c0_6 = arith.constant 0 : index
    %c0_7 = arith.constant 0 : index
    %8 = vector.load %arg7[%c0_6, %c0_7] : memref<8x128xf32, #tpu.memory_space<vmem>>, vector<8x128xf32>
    tpu.vector_store %arg7[%c0_6, %c0_7], %7 {strides = array<i32>} : memref<8x128xf32, #tpu.memory_space<vmem>>, vector<8x128xf32>,
    %c1_i32 = arith.constant 1 : i32
    %9 = arith.cmpi eq, %arg2, %c1_i32 : i32
    %10 = arith.extui %9 : i1 to i32
    %c0_i32_8 = arith.constant 0 : i32
    %11 = arith.cmpi ne, %10, %c0_i32_8 : i32
    scf.if %11 {
      %c0_9 = arith.constant 0 : index
      %c0_10 = arith.constant 0 : index
      %12 = vector.load %arg7[%c0_9, %c0_10] : memref<8x128xf32, #tpu.memory_space<vmem>>, vector<8x128xf32>
      %c0_11 = arith.constant 0 : index
      %c0_12 = arith.constant 0 : index
      %13 = vector.load %arg6[%c0_11, %c0_12] : memref<8x128xf32, #tpu.memory_space<vmem>>, vector<8x128xf32>
      tpu.vector_store %arg6[%c0_11, %c0_12], %12 {strides = array<i32>} : memref<8x128xf32, #tpu.memory_space<vmem>>, vector<8x128xf32>,
    } else {
    }
    return
  }
  func.func @transform_0(%arg0: i32, %arg1: i32, %arg2: i32) -> (i32, i32) {
    %c0_i32 = arith.constant 0 : i32
    return %arg0, %arg2 : i32, i32
  }
  func.func @transform_1(%arg0: i32, %arg1: i32, %arg2: i32) -> (i32, i32) {
    %c0_i32 = arith.constant 0 : i32
    return %arg2, %arg1 : i32, i32
  }
  func.func @transform_2(%arg0: i32, %arg1: i32, %arg2: i32) -> (i32, i32) {
    %c0_i32 = arith.constant 0 : i32
    %c0_i32_0 = arith.constant 0 : i32
    return %c0_i32, %arg1 : i32, i32
  }
  func.func @transform_3(%arg0: i32, %arg1: i32, %arg2: i32) -> (i32, i32) {
    %c0_i32 = arith.constant 0 : i32
    return %arg0, %arg1 : i32, i32
  }
}

</mosaic_0001>

<llo_original>
// kernel: linear_classifier_forward.1
$region0: #{linear_classifier_forward.1}
  #allocation0 [shape = 'u32[]', space=smem, size = 0x4, offset = 0x4, fixed_abs, tag = 'smem constant byte address 0x4 - core index']
  #allocation1 [shape = 'u32[72,128]{1,0:T(1,128)}', space=vmem, size = 0x9000, scoped, tag = 'internal scratch']
  #allocation2 [shape = 'f32[8,128]{1,0:T(8,128)}', space=vmem, size = 0x1000, scoped, tag = 'scratch operand']
  %s0 = inlined_call_operand.vmem [shape: bf16[8,1024], index: 0, kind: input, shape index: {}]
  %s1 = inlined_call_operand.hbm [shape: bf16[1024,128], index: 1, kind: input, shape index: {}]
  %s2 = inlined_call_operand.vmem [shape: f32[1,128], index: 2, kind: input, shape index: {}]
  %s3 = inlined_call_operand.vmem [shape: f32[8,128], index: 3, kind: output, shape index: {}]
  %s4 = sld [smem:[#allocation0]]
  $region57: #{linear_classifier_forward.1} parent=0
    _
  %s6 = ssub.s32 1, %s4
  %s7 = scalar_select 0, %s6, %s4
  $region1: #{linear_classifier_forward.1} parent=0
    #allocation3 [shape = 'u8[262144]{0}', space=vmem, size = 0x40000, scoped, tag = 'input window, operand 1']
    #allocation4 [shape = 's32[2]{0}', space=sflag, size = 0x8, scoped, tag = 'scoped memory for linear_classifier_forward.1']
    %8 = vsyncpa [#allocation4], 0
    %s9 = scalar_lea.sflag [#allocation4], 1
    %10 = vsyncpa %s9, 0
    loop: start=0, step=1, limit=4
    $region2: #{linear_classifier_forward.1} parent=1 // loop_pre_header
      _
    $region3: #{linear_classifier_forward.1} parent=1 // loop_header
      %s12 = sphi 0, %s16
      %p13 = scmp.ge.s32.totalorder %s12, 4
      %s19 = sphi 0, %s38
      %s20 = sphi 0, %s34
      %s21 = sphi 0, %s30
      %s22 = sphi 0, %s19
      %s23 = sphi 0, %s20
      %s24 = sphi 0, %s21
      %s25 = sphi 0, %s22
      %s26 = sphi 0, %s23
      %s27 = sphi 0, %s24
      %s43 = sphi 0, %s45
      %s46 = sphi 0, %s43
      %s47 = sphi 0, %s46
      %s63 = sphi 0, %s47
      %s71 = sphi 0, %s73
      %s74 = sphi 0, %s71
      %s75 = sphi 0, %s74
      %s91 = sphi 0, %s75
      %s97 = sphi 0, %s99
      %s100 = sphi 0, %s97
      %s101 = sphi 0, %s100
      %s117 = sphi 0, %s101
      %s125 = sphi 0, %s127
      %s128 = sphi 0, %s125
      %s129 = sphi 0, %s128
      %s145 = sphi 0, %s129
    $region4: #{linear_classifier_forward.1} parent=1 // loop_header_branch
      %15 = sbr.rel (%p13) target = $region8
    $region5: #{linear_classifier_forward.1} parent=1 // loop_body
      %s17 = ssub.s32 %s12, 1
      %s18 = ssub.s32 %s12, 2
      %s28 = sadd.s32 1, %s21
      %p29 = scmp.ge.s32.totalorder %s28, 2
      %s30 = scalar_select %p29, 0, %s28
      %s31 = sadd.s32 1, %s20
      %s32 = scalar_select %p29, %s31, %s20
      %p33 = scmp.ge.s32.totalorder %s32, 1
      %s34 = scalar_select %p33, 0, %s32
      %s35 = sadd.s32 1, %s19
      %s36 = scalar_select %p33, %s35, %s19
      %p37 = scmp.ge.s32.totalorder %s36, 1
      %s38 = scalar_select %p37, 0, %s36
      %s39 = ssub.s32 %s19, %s38
      %s40 = ssub.s32 %s21, %s30
      %s41 = sor.u32 %s39, %s40
      %p42 = scmp.eq.s32.totalorder %s41, 0
      %s44 = sadd.s32 %s43, 1
      %s45 = scalar_select %p42, %s43, %s44
      %p48 = pneg %p42
      %p49 = scmp.eq.s32.totalorder %s12, 1
      %p50 = por %p48, %p49
      %p51 = scmp.ne.s32.totalorder %s43, %s46
      %p52 = scmp.eq.s32.totalorder %s12, 0
      %p53 = por %p51, %p52
      %p54 = scmp.ne.s32.totalorder %s43, %s46
      %p55 = scmp.eq.s32.totalorder %s17, 1
      %p56 = por %p54, %p55
      %p57 = scmp.ne.s32.totalorder %s46, %s47
      %p58 = scmp.eq.s32.totalorder %s17, 0
      %p59 = por %p57, %p58
      %p60 = scmp.ne.s32.totalorder %s46, %s47
      %p61 = scmp.eq.s32.totalorder %s18, 1
      %p62 = por %p60, %p61
      %p64 = scmp.ne.s32.totalorder %s47, %s63
      %p65 = scmp.eq.s32.totalorder %s18, 0
      %p66 = por %p64, %p65
      %s67 = ssub.s32 %s21, %s30
      %s68 = ssub.s32 %s20, %s34
      %s69 = sor.u32 %s67, %s68
      %p70 = scmp.eq.s32.totalorder %s69, 0
      %s72 = sadd.s32 %s71, 1
      %s73 = scalar_select %p70, %s71, %s72
      %p76 = pneg %p70
      %p77 = scmp.eq.s32.totalorder %s12, 1
      %p78 = por %p76, %p77
      %p79 = scmp.ne.s32.totalorder %s71, %s74
      %p80 = scmp.eq.s32.totalorder %s12, 0
      %p81 = por %p79, %p80
      %p82 = scmp.ne.s32.totalorder %s71, %s74
      %p83 = scmp.eq.s32.totalorder %s17, 1
      %p84 = por %p82, %p83
      %p85 = scmp.ne.s32.totalorder %s74, %s75
      %p86 = scmp.eq.s32.totalorder %s17, 0
      %p87 = por %p85, %p86
      %p88 = scmp.ne.s32.totalorder %s74, %s75
      %p89 = scmp.eq.s32.totalorder %s18, 1
      %p90 = por %p88, %p89
      %p92 = scmp.ne.s32.totalorder %s75, %s91
      %p93 = scmp.eq.s32.totalorder %s18, 0
      %p94 = por %p92, %p93
      %s95 = ssub.s32 %s20, %s34
      %p96 = scmp.eq.s32.totalorder %s95, 0
      %s98 = sadd.s32 %s97, 1
      %s99 = scalar_select %p96, %s97, %s98
      %p102 = pneg %p96
      %p103 = scmp.eq.s32.totalorder %s12, 1
      %p104 = por %p102, %p103
      %p105 = scmp.ne.s32.totalorder %s97, %s100
      %p106 = scmp.eq.s32.totalorder %s12, 0
      %p107 = por %p105, %p106
      %p108 = scmp.ne.s32.totalorder %s97, %s100
      %p109 = scmp.eq.s32.totalorder %s17, 1
      %p110 = por %p108, %p109
      %p111 = scmp.ne.s32.totalorder %s100, %s101
      %p112 = scmp.eq.s32.totalorder %s17, 0
      %p113 = por %p111, %p112
      %p114 = scmp.ne.s32.totalorder %s100, %s101
      %p115 = scmp.eq.s32.totalorder %s18, 1
      %p116 = por %p114, %p115
      %p118 = scmp.ne.s32.totalorder %s101, %s117
      %p119 = scmp.eq.s32.totalorder %s18, 0
      %p120 = por %p118, %p119
      %s121 = ssub.s32 %s19, %s38
      %s122 = ssub.s32 %s20, %s34
      %s123 = sor.u32 %s121, %s122
      %p124 = scmp.eq.s32.totalorder %s123, 0
      %s126 = sadd.s32 %s125, 1
      %s127 = scalar_select %p124, %s125, %s126
      %p130 = pneg %p124
      %p131 = scmp.eq.s32.totalorder %s12, 1
      %p132 = por %p130, %p131
      %p133 = scmp.ne.s32.totalorder %s125, %s128
      %p134 = scmp.eq.s32.totalorder %s12, 0
      %p135 = por %p133, %p134
      %p136 = scmp.ne.s32.totalorder %s125, %s128
      %p137 = scmp.eq.s32.totalorder %s17, 1
      %p138 = por %p136, %p137
      %p139 = scmp.ne.s32.totalorder %s128, %s129
      %p140 = scmp.eq.s32.totalorder %s17, 0
      %p141 = por %p139, %p140
      %p142 = scmp.ne.s32.totalorder %s128, %s129
      %p143 = scmp.eq.s32.totalorder %s18, 1
      %p144 = por %p142, %p143
      %p146 = scmp.ne.s32.totalorder %s129, %s145
      %p147 = scmp.eq.s32.totalorder %s18, 0
      %p148 = por %p146, %p147
      %p149 = scmp.le.s32.totalorder 1, %s12
      %p150 = scmp.lt.s32.totalorder %s12, 3
      %p151 = pnand %p149, %p150
      %p152 = pneg %p151
      // Predicated region
      $region9: #{linear_classifier_forward.1} parent=5 // pred_check
        _
      $region10: #{linear_classifier_forward.1} parent=5 // pred_check_branch
        %154 = sbr.rel (%p151) target = $region12
      $region11: #{linear_classifier_forward.1} parent=5 // pred_region
        %s155 = ssub.s32 %s12, 1
        // Predicated region
        $region13: #{linear_classifier_forward.1} parent=11 // pred_check
          %p156 = pneg %p113
        $region14: #{linear_classifier_forward.1} parent=11 // pred_check_branch
          %158 = sbr.rel (%p156) target = $region16
        $region15: #{linear_classifier_forward.1} parent=11 // pred_region
          %p159 = scmp.lt.s32.totalorder %s23, 0
          %s160 = scalar_select %p159, %s23, 0
          %s161 = scalar_lea.vmem %s2, %s160
        $region16: #{linear_classifier_forward.1} parent=11 // pred_fallthru
          _
      $region12: #{linear_classifier_forward.1} parent=5 // pred_fallthru
        _
      %p162 = scmp.lt.s32.totalorder %s12, 2
      // Predicated region
      $region17: #{linear_classifier_forward.1} parent=5 // pred_check
        %p163 = pneg %p162
      $region18: #{linear_classifier_forward.1} parent=5 // pred_check_branch
        %165 = sbr.rel (%p163) target = $region20
      $region19: #{linear_classifier_forward.1} parent=5 // pred_region
        // Predicated region
        $region21: #{linear_classifier_forward.1} parent=19 // pred_check
          %p166 = pneg %p53
        $region22: #{linear_classifier_forward.1} parent=19 // pred_check_branch
          %168 = sbr.rel (%p166) target = $region24
        $region23: #{linear_classifier_forward.1} parent=19 // pred_region
          %s169 = smul.u32 4, %s21
          %p170 = scmp.lt.s32.totalorder %s19, 0
          %s171 = scalar_select %p170, %s19, 0
          %p172 = scmp.lt.s32.totalorder %s169, 7
          %s173 = scalar_select %p172, %s169, 7
          %s174 = smul.addr %s171, 8
          %s175 = sadd.s32 %s173, %s174
          %s176 = smul.addr %s175, 4
          %s177 = scalar_lea.vmem %s0, %s176
          %s178 = smul.u32 4, %s21
        $region24: #{linear_classifier_forward.1} parent=19 // pred_fallthru
          _
        // Predicated region
        $region25: #{linear_classifier_forward.1} parent=19 // pred_check
          %p179 = pneg %p81
        $region26: #{linear_classifier_forward.1} parent=19 // pred_check_branch
          %181 = sbr.rel (%p179) target = $region28
        $region27: #{linear_classifier_forward.1} parent=19 // pred_region
          %s182 = sand.u32 %s71, 1
          %s183 = scalar_lea.sflag [#allocation4], %s182
          %s184 = sand.u32 %s71, 1
          %s185 = smul.addr %s184, 256
          %s186 = scalar_lea.vmem [#allocation3], %s185
          %s187 = smul.u32 64, %s21
          %189 = vsyncadd %s183, 0
          %s190 = sadd.s32 %s20, %s187
          %s191 = smul.addr %s190, 4
          %s192 = scalar_lea.hbm %s1, %s191
          %s193 = sshll.u32 %s192, 4
          %s194 = int_to_ptr.hbm [resolvable:$true] %s193
          %s195 = sshll.u32 %s186, 4
          %s196 = int_to_ptr.vmem [resolvable:$true] %s195
          %201 = dma.hbm_to_vmem [thread:$0]  %s194, 4096, %s196, %s183, 64, 64, 4
        $region28: #{linear_classifier_forward.1} parent=19 // pred_fallthru
          _
      $region20: #{linear_classifier_forward.1} parent=5 // pred_fallthru
        _
      %p202 = scmp.le.s32.totalorder 1, %s12
      %p203 = scmp.lt.s32.totalorder %s12, 3
      %p204 = pnand %p202, %p203
      %p205 = pneg %p204
      // Predicated region
      $region29: #{linear_classifier_forward.1} parent=5 // pred_check
        _
      $region30: #{linear_classifier_forward.1} parent=5 // pred_check_branch
        %207 = sbr.rel (%p204) target = $region32
      $region31: #{linear_classifier_forward.1} parent=5 // pred_region
        %s208 = ssub.s32 %s12, 1
        %s209 = sand.u32 %s74, 1
        %s210 = scalar_lea.sflag [#allocation4], %s209
        %s211 = sand.u32 %s74, 1
        %s212 = smul.addr %s211, 256
        %s213 = scalar_lea.vmem [#allocation3], %s212
        // Predicated region
        $region33: #{linear_classifier_forward.1} parent=31 // pred_check
          %p214 = pneg %p87
        $region34: #{linear_classifier_forward.1} parent=31 // pred_check_branch
          %216 = sbr.rel (%p214) target = $region36
        $region35: #{linear_classifier_forward.1} parent=31 // pred_region
          %218 = dma.done %s210, 4096
        $region36: #{linear_classifier_forward.1} parent=31 // pred_fallthru
          _
        %s219 = smul.u32 4, %s24
        %p220 = scmp.lt.s32.totalorder %s22, 0
        %s221 = scalar_select %p220, %s22, 0
        %p222 = scmp.lt.s32.totalorder %s219, 7
        %s223 = scalar_select %p222, %s219, 7
        %s224 = smul.addr %s221, 8
        %s225 = sadd.s32 %s223, %s224
        %s226 = smul.addr %s225, 4
        %s227 = scalar_lea.vmem %s0, %s226
        %p228 = pneg %p59
        %p229 = pneg %p56
        %s230 = sand.u32 %s74, 1
        %s231 = scalar_lea.sflag [#allocation4], %s230
        %s232 = sand.u32 %s74, 1
        %s233 = smul.addr %s232, 256
        %s234 = scalar_lea.vmem [#allocation3], %s233
        %p235 = pneg %p87
        %p236 = pneg %p84
        %p237 = scmp.lt.s32.totalorder %s23, 0
        %s238 = scalar_select %p237, %s23, 0
        %s239 = scalar_lea.vmem %s2, %s238
        %p240 = pneg %p113
        %p241 = pneg %p110
        %p242 = pneg %p141
        %p243 = pneg %p138
        %p244 = scmp.lt.s32.totalorder %s22, 0
        %s245 = scalar_select %p244, %s22, 0
        %p246 = scmp.lt.s32.totalorder %s23, 0
        %s247 = scalar_select %p246, %s23, 0
        %s248 = sadd.s32 %s247, %s245
        %s249 = smul.addr %s248, 8
        %s250 = scalar_lea.vmem %s3, %s249
        %s251 = smul.u32 4, %s24
        %p252 = scmp.lt.s32.totalorder %s22, 0
        %s253 = scalar_select %p252, %s22, 0
        %p254 = scmp.lt.s32.totalorder %s251, 7
        %s255 = scalar_select %p254, %s251, 7
        %s256 = smul.addr %s253, 8
        %s257 = sadd.s32 %s255, %s256
        %s258 = smul.addr %s257, 4
        %s259 = scalar_lea.vmem %s0, %s258
        %s260 = smul.u32 4, %s24
        %s261 = smul.u32 64, %s24
        %p262 = scmp.lt.s32.totalorder %s23, 0
        %s263 = scalar_select %p262, %s23, 0
        %s264 = scalar_lea.vmem %s2, %s263
        %p265 = scmp.lt.s32.totalorder %s22, 0
        %s266 = scalar_select %p265, %s22, 0
        %p267 = scmp.lt.s32.totalorder %s23, 0
        %s268 = scalar_select %p267, %s23, 0
        %s269 = sadd.s32 %s268, %s266
        %s270 = smul.addr %s269, 8
        %s271 = scalar_lea.vmem %s3, %s270
        %p272 = scmp.eq.s32.totalorder %s24, 0
        // Predicated region
        $region37: #{linear_classifier_forward.1} parent=31 // pred_check
          %p273 = pneg %p272
        $region38: #{linear_classifier_forward.1} parent=31 // pred_check_branch
          %275 = sbr.rel (%p273) target = $region40
        $region39: #{linear_classifier_forward.1} parent=31 // pred_region
          %v276 = vld [vmem:[%s264] sm:$0x1]
          %v278 = vperm.slane %v276, 0
          %280 = vst [vmem:[#allocation2] sm:$0xff] %v278
        $region40: #{linear_classifier_forward.1} parent=31 // pred_fallthru
          _
        %v281 = vld [vmem:[#allocation2] sm:$0xff]
        %v282 = vld [vmem:[%s259] sm:$0xff]
        %v283 = vld [vmem:[%s259 + $0x8] sm:$0xff]
        %v284 = vld [vmem:[%s213] sm:$0xf]
        %v285 = vld [vmem:[%s213 + $0x4] sm:$0xf]
        %v286 = vld [vmem:[%s213 + $0x8] sm:$0xf]
        %v287 = vld [vmem:[%s213 + $0xc] sm:$0xf]
        %v288 = vld [vmem:[%s213 + $0x10] sm:$0xf]
        %v289 = vld [vmem:[%s213 + $0x14] sm:$0xf]
        %v290 = vld [vmem:[%s213 + $0x18] sm:$0xf]
        %v291 = vld [vmem:[%s213 + $0x1c] sm:$0xf]
        %v292 = vld [vmem:[%s213 + $0x20] sm:$0xf]
        %v293 = vld [vmem:[%s213 + $0x24] sm:$0xf]
        %v294 = vld [vmem:[%s213 + $0x28] sm:$0xf]
        %v295 = vld [vmem:[%s213 + $0x2c] sm:$0xf]
        %v296 = vld [vmem:[%s213 + $0x30] sm:$0xf]
        %v297 = vld [vmem:[%s213 + $0x34] sm:$0xf]
        %v298 = vld [vmem:[%s213 + $0x38] sm:$0xf]
        %v299 = vld [vmem:[%s213 + $0x3c] sm:$0xf]
        %v300 = vld [vmem:[%s213 + $0x40] sm:$0xf]
        %v301 = vld [vmem:[%s213 + $0x44] sm:$0xf]
        %v302 = vld [vmem:[%s213 + $0x48] sm:$0xf]
        %v303 = vld [vmem:[%s213 + $0x4c] sm:$0xf]
        %v304 = vld [vmem:[%s213 + $0x50] sm:$0xf]
        %v305 = vld [vmem:[%s213 + $0x54] sm:$0xf]
        %v306 = vld [vmem:[%s213 + $0x58] sm:$0xf]
        %v307 = vld [vmem:[%s213 + $0x5c] sm:$0xf]
        %v308 = vld [vmem:[%s213 + $0x60] sm:$0xf]
        %v309 = vld [vmem:[%s213 + $0x64] sm:$0xf]
        %v310 = vld [vmem:[%s213 + $0x68] sm:$0xf]
        %v311 = vld [vmem:[%s213 + $0x6c] sm:$0xf]
        %v312 = vld [vmem:[%s213 + $0x70] sm:$0xf]
        %v313 = vld [vmem:[%s213 + $0x74] sm:$0xf]
        %v314 = vld [vmem:[%s213 + $0x78] sm:$0xf]
        %v315 = vld [vmem:[%s213 + $0x7c] sm:$0xf]
        %v316 = vld [vmem:[%s213 + $0x80] sm:$0xf]
        %v317 = vld [vmem:[%s213 + $0x84] sm:$0xf]
        %v318 = vld [vmem:[%s213 + $0x88] sm:$0xf]
        %v319 = vld [vmem:[%s213 + $0x8c] sm:$0xf]
        %v320 = vld [vmem:[%s213 + $0x90] sm:$0xf]
        %v321 = vld [vmem:[%s213 + $0x94] sm:$0xf]
        %v322 = vld [vmem:[%s213 + $0x98] sm:$0xf]
        %v323 = vld [vmem:[%s213 + $0x9c] sm:$0xf]
        %v324 = vld [vmem:[%s213 + $0xa0] sm:$0xf]
        %v325 = vld [vmem:[%s213 + $0xa4] sm:$0xf]
        %v326 = vld [vmem:[%s213 + $0xa8] sm:$0xf]
        %v327 = vld [vmem:[%s213 + $0xac] sm:$0xf]
        %v328 = vld [vmem:[%s213 + $0xb0] sm:$0xf]
        %v329 = vld [vmem:[%s213 + $0xb4] sm:$0xf]
        %v330 = vld [vmem:[%s213 + $0xb8] sm:$0xf]
        %v331 = vld [vmem:[%s213 + $0xbc] sm:$0xf]
        %v332 = vld [vmem:[%s213 + $0xc0] sm:$0xf]
        %v333 = vld [vmem:[%s213 + $0xc4] sm:$0xf]
        %v334 = vld [vmem:[%s213 + $0xc8] sm:$0xf]
        %v335 = vld [vmem:[%s213 + $0xcc] sm:$0xf]
        %v336 = vld [vmem:[%s213 + $0xd0] sm:$0xf]
        %v337 = vld [vmem:[%s213 + $0xd4] sm:$0xf]
        %v338 = vld [vmem:[%s213 + $0xd8] sm:$0xf]
        %v339 = vld [vmem:[%s213 + $0xdc] sm:$0xf]
        %v340 = vld [vmem:[%s213 + $0xe0] sm:$0xf]
        %v341 = vld [vmem:[%s213 + $0xe4] sm:$0xf]
        %v342 = vld [vmem:[%s213 + $0xe8] sm:$0xf]
        %v343 = vld [vmem:[%s213 + $0xec] sm:$0xf]
        %v344 = vld [vmem:[%s213 + $0xf0] sm:$0xf]
        %v345 = vld [vmem:[%s213 + $0xf4] sm:$0xf]
        %v346 = vld [vmem:[%s213 + $0xf8] sm:$0xf]
        %v347 = vld [vmem:[%s213 + $0xfc] sm:$0xf]
        %v350 = vunpack.c.l.b16 %v282
        %v351 = vunpack.c.h.b16 %v282
        %v352 = vunpack.c.l.b16 %v283
        %v353 = vunpack.c.h.b16 %v283
        %v354 = vpack.c.b16 %v350, %v350
        %v355 = vpack.c.b16 %v351, %v351
        %v356 = vpack.c.b16 %v352, %v352
        %v357 = vpack.c.b16 %v353, %v353
        %v426 = vunpack.c.l.b16 %v284
        %v427 = vunpack.c.l.b16 %v285
        %v428 = vunpack.c.l.b16 %v286
        %v429 = vunpack.c.l.b16 %v287
        %v430 = vunpack.c.l.b16 %v288
        %v431 = vunpack.c.l.b16 %v289
        %v432 = vunpack.c.l.b16 %v290
        %v433 = vunpack.c.l.b16 %v291
        %v434 = vunpack.c.l.b16 %v292
        %v435 = vunpack.c.l.b16 %v293
        %v436 = vunpack.c.l.b16 %v294
        %v437 = vunpack.c.l.b16 %v295
        %v438 = vunpack.c.l.b16 %v296
        %v439 = vunpack.c.l.b16 %v297
        %v440 = vunpack.c.l.b16 %v298
        %v441 = vunpack.c.l.b16 %v299
        %v442 = vunpack.c.l.b16 %v300
        %v443 = vunpack.c.l.b16 %v301
        %v444 = vunpack.c.l.b16 %v302
        %v445 = vunpack.c.l.b16 %v303
        %v446 = vunpack.c.l.b16 %v304
        %v447 = vunpack.c.l.b16 %v305
        %v448 = vunpack.c.l.b16 %v306
        %v449 = vunpack.c.l.b16 %v307
        %v450 = vunpack.c.l.b16 %v308
        %v451 = vunpack.c.l.b16 %v309
        %v452 = vunpack.c.l.b16 %v310
        %v453 = vunpack.c.l.b16 %v311
        %v454 = vunpack.c.l.b16 %v312
        %v455 = vunpack.c.l.b16 %v313
        %v456 = vunpack.c.l.b16 %v314
        %v457 = vunpack.c.l.b16 %v315
        %v458 = vunpack.c.l.b16 %v316
        %v459 = vunpack.c.l.b16 %v317
        %v460 = vunpack.c.l.b16 %v318
        %v461 = vunpack.c.l.b16 %v319
        %v462 = vunpack.c.l.b16 %v320
        %v463 = vunpack.c.l.b16 %v321
        %v464 = vunpack.c.l.b16 %v322
        %v465 = vunpack.c.l.b16 %v323
        %v466 = vunpack.c.l.b16 %v324
        %v467 = vunpack.c.l.b16 %v325
        %v468 = vunpack.c.l.b16 %v326
        %v469 = vunpack.c.l.b16 %v327
        %v470 = vunpack.c.l.b16 %v328
        %v471 = vunpack.c.l.b16 %v329
        %v472 = vunpack.c.l.b16 %v330
        %v473 = vunpack.c.l.b16 %v331
        %v474 = vunpack.c.l.b16 %v332
        %v475 = vunpack.c.l.b16 %v333
        %v476 = vunpack.c.l.b16 %v334
        %v477 = vunpack.c.l.b16 %v335
        %v478 = vunpack.c.l.b16 %v336
        %v479 = vunpack.c.l.b16 %v337
        %v480 = vunpack.c.l.b16 %v338
        %v481 = vunpack.c.l.b16 %v339
        %v482 = vunpack.c.l.b16 %v340
        %v483 = vunpack.c.l.b16 %v341
        %v484 = vunpack.c.l.b16 %v342
        %v485 = vunpack.c.l.b16 %v343
        %v486 = vunpack.c.l.b16 %v344
        %v487 = vunpack.c.l.b16 %v345
        %v488 = vunpack.c.l.b16 %v346
        %v489 = vunpack.c.l.b16 %v347
        %v490 = vpack.c.b16 %v427, %v426
        %v491 = vpack.c.b16 %v429, %v428
        %v492 = vpack.c.b16 %v431, %v430
        %v493 = vpack.c.b16 %v433, %v432
        %v494 = vpack.c.b16 %v435, %v434
        %v495 = vpack.c.b16 %v437, %v436
        %v496 = vpack.c.b16 %v439, %v438
        %v497 = vpack.c.b16 %v441, %v440
        %v498 = vpack.c.b16 %v443, %v442
        %v499 = vpack.c.b16 %v445, %v444
        %v500 = vpack.c.b16 %v447, %v446
        %v501 = vpack.c.b16 %v449, %v448
        %v502 = vpack.c.b16 %v451, %v450
        %v503 = vpack.c.b16 %v453, %v452
        %v504 = vpack.c.b16 %v455, %v454
        %v505 = vpack.c.b16 %v457, %v456
        %v506 = vpack.c.b16 %v459, %v458
        %v507 = vpack.c.b16 %v461, %v460
        %v508 = vpack.c.b16 %v463, %v462
        %v509 = vpack.c.b16 %v465, %v464
        %v510 = vpack.c.b16 %v467, %v466
        %v511 = vpack.c.b16 %v469, %v468
        %v512 = vpack.c.b16 %v471, %v470
        %v513 = vpack.c.b16 %v473, %v472
        %v514 = vpack.c.b16 %v475, %v474
        %v515 = vpack.c.b16 %v477, %v476
        %v516 = vpack.c.b16 %v479, %v478
        %v517 = vpack.c.b16 %v481, %v480
        %v518 = vpack.c.b16 %v483, %v482
        %v519 = vpack.c.b16 %v485, %v484
        %v520 = vpack.c.b16 %v487, %v486
        %v521 = vpack.c.b16 %v489, %v488
        %554 = vmatpush.bf16.msra.mxu0 %v497
        %555 = vmatpush.bf16.msra.mxu0 %v496
        %556 = vmatpush.bf16.msra.mxu0 %v495
        %557 = vmatpush.bf16.msra.mxu0 %v494
        %558 = vmatpush.bf16.msra.mxu0 %v493
        %559 = vmatpush.bf16.msra.mxu0 %v492
        %560 = vmatpush.bf16.msra.mxu0 %v491
        %561 = vmatpush.bf16.msra.mxu0 %v490
        %562 = vmatmul.bf16.gmra.mxu0 %v354
        %v563 = vpop.f32.mrf.mxu0
        %v564 = vadd.f32 0.0, %v563
        %v565 = vpop.f32.mrf.mxu0
        %566 = vdwg.mxu0
        %567 = vmatpush.bf16.msra.mxu0 %v505
        %568 = vmatpush.bf16.msra.mxu0 %v504
        %569 = vmatpush.bf16.msra.mxu0 %v503
        %570 = vmatpush.bf16.msra.mxu0 %v502
        %571 = vmatpush.bf16.msra.mxu0 %v501
        %572 = vmatpush.bf16.msra.mxu0 %v500
        %573 = vmatpush.bf16.msra.mxu0 %v499
        %574 = vmatpush.bf16.msra.mxu0 %v498
        %575 = vmatmul.bf16.gmra.mxu0 %v355
        %v576 = vpop.f32.mrf.mxu0
        %v577 = vadd.f32 %v564, %v576
        %v578 = vpop.f32.mrf.mxu0
        %579 = vdwg.mxu0
        %580 = vmatpush.bf16.msra.mxu0 %v513
        %581 = vmatpush.bf16.msra.mxu0 %v512
        %582 = vmatpush.bf16.msra.mxu0 %v511
        %583 = vmatpush.bf16.msra.mxu0 %v510
        %584 = vmatpush.bf16.msra.mxu0 %v509
        %585 = vmatpush.bf16.msra.mxu0 %v508
        %586 = vmatpush.bf16.msra.mxu0 %v507
        %587 = vmatpush.bf16.msra.mxu0 %v506
        %588 = vmatmul.bf16.gmra.mxu0 %v356
        %v589 = vpop.f32.mrf.mxu0
        %v590 = vadd.f32 %v577, %v589
        %v591 = vpop.f32.mrf.mxu0
        %592 = vdwg.mxu0
        %593 = vmatpush.bf16.msra.mxu0 %v521
        %594 = vmatpush.bf16.msra.mxu0 %v520
        %595 = vmatpush.bf16.msra.mxu0 %v519
        %596 = vmatpush.bf16.msra.mxu0 %v518
        %597 = vmatpush.bf16.msra.mxu0 %v517
        %598 = vmatpush.bf16.msra.mxu0 %v516
        %599 = vmatpush.bf16.msra.mxu0 %v515
        %600 = vmatpush.bf16.msra.mxu0 %v514
        %601 = vmatmul.bf16.gmra.mxu0 %v357
        %v602 = vpop.f32.mrf.mxu0
        %v603 = vadd.f32 %v590, %v602
        %v604 = vpop.f32.mrf.mxu0
        %605 = vdwg.mxu0
        %v606 = vadd.f32 %v281, %v603
        %607 = vst [vmem:[#allocation2] sm:$0xff] %v606
        %p608 = scmp.eq.s32.totalorder %s24, 1
        // Predicated region
        $region41: #{linear_classifier_forward.1} parent=31 // pred_check
          %p609 = pneg %p608
        $region42: #{linear_classifier_forward.1} parent=31 // pred_check_branch
          %611 = sbr.rel (%p609) target = $region44
        $region43: #{linear_classifier_forward.1} parent=31 // pred_region
          %v612 = vld [vmem:[#allocation2] sm:$0xff]
          %613 = vst [vmem:[%s271] sm:$0xff] %v612
        $region44: #{linear_classifier_forward.1} parent=31 // pred_fallthru
          _
        %p614 = scmp.lt.s32.totalorder %s22, 0
        %s615 = scalar_select %p614, %s22, 0
        %p616 = scmp.lt.s32.totalorder %s23, 0
        %s617 = scalar_select %p616, %s23, 0
        %s618 = sadd.s32 %s617, %s615
        %s619 = smul.addr %s618, 8
        %s620 = scalar_lea.vmem %s3, %s619
        // Predicated region
        $region45: #{linear_classifier_forward.1} parent=31 // pred_check
          %p621 = pneg %p138
        $region46: #{linear_classifier_forward.1} parent=31 // pred_check_branch
          %623 = sbr.rel (%p621) target = $region48
        $region47: #{linear_classifier_forward.1} parent=31 // pred_region
          _
        $region48: #{linear_classifier_forward.1} parent=31 // pred_fallthru
          _
        // Predicated region
        $region49: #{linear_classifier_forward.1} parent=31 // pred_check
          %p624 = pneg %p138
        $region50: #{linear_classifier_forward.1} parent=31 // pred_check_branch
          %626 = sbr.rel (%p624) target = $region52
        $region51: #{linear_classifier_forward.1} parent=31 // pred_region
          %p627 = scmp.lt.s32.totalorder %s22, 0
          %s628 = scalar_select %p627, %s22, 0
          %p629 = scmp.lt.s32.totalorder %s23, 0
          %s630 = scalar_select %p629, %s23, 0
          %s631 = sadd.s32 %s630, %s628
          %s632 = smul.addr %s631, 8
          %s633 = scalar_lea.vmem %s3, %s632
        $region52: #{linear_classifier_forward.1} parent=31 // pred_fallthru
          _
      $region32: #{linear_classifier_forward.1} parent=5 // pred_fallthru
        _
      %p634 = scmp.le.s32.totalorder 2, %s12
      // Predicated region
      $region53: #{linear_classifier_forward.1} parent=5 // pred_check
        %p635 = pneg %p634
      $region54: #{linear_classifier_forward.1} parent=5 // pred_check_branch
        %637 = sbr.rel (%p635) target = $region56
      $region55: #{linear_classifier_forward.1} parent=5 // pred_region
        %s638 = ssub.s32 %s12, 2
      $region56: #{linear_classifier_forward.1} parent=5 // pred_fallthru
        _
    $region6: #{linear_classifier_forward.1} parent=1 // loop_footer
      %s16 = sadd.s32 1, %s12
    $region7: #{linear_classifier_forward.1} parent=1 // loop_footer_branch
      %11 = sbr.rel target = $region3
    $region8: #{linear_classifier_forward.1} parent=1 // loop_exit
      _
    %639 = vsyncpa [#allocation4], 1
    %s640 = scalar_lea.sflag [#allocation4], 1
    %641 = vsyncpa %s640, 1

</llo_original>
